<compile_context>
chip_gen: v7x
topology: tpu7x:2x2x1
jax: 0.10.0
libtpu: 0.0.40
codegen_flags: <defaults>
</compile_context>

<pallas_src>
import jax
import jax.numpy as jnp
from jax import lax
from jax.experimental import pallas as pl
from jax.experimental.pallas import tpu as pltpu


# ----------------------------------------------------------------------------
# Pass 1: row-wise L2 normalization (F.normalize, eps = 1e-12).
# ----------------------------------------------------------------------------
def _normalize_kernel(f_ref, o_ref):
    f = f_ref[...]                                        # (TB, D) f32
    sq = jnp.sum(f * f, axis=1, keepdims=True)            # (TB, 1)
    # x / max(||x||, 1e-12) == x * rsqrt(max(||x||^2, 1e-24))  (rsqrt -> EUP)
    inv = lax.rsqrt(jnp.maximum(sq, 1e-24))
    o_ref[...] = f * inv


# ----------------------------------------------------------------------------
# Pass 2: one (TB_i, TB_j) block of the loss, accumulated over j per row block.
# ----------------------------------------------------------------------------
def _con_loss_block_kernel(fr_ref, fc_ref, lab_col_ref, lab_row_ref, out_ref):
    j = pl.program_id(1)

    @pl.when(j == 0)
    def _init():
        out_ref[0, 0] = 0.0

    # cos[i, j] = <fn_i, fn_j>; contract both operands on their lane axis,
    # avoiding an explicit transpose of the (TB, D) tile.
    cos = lax.dot_general(
        fr_ref[...], fc_ref[...],
        dimension_numbers=(((1,), (1,)), ((), ())),
        preferred_element_type=jnp.float32)               # (TB, TB) f32

    # Fused pos/neg selection: where(label match, 1 - cos, clamp(cos - 0.4, 0))
    pos = lab_col_ref[...] == lab_row_ref[...]            # (TB, TB) bool
    elem = jnp.where(pos, 1.0 - cos, jnp.maximum(cos - 0.4, 0.0))

    out_ref[0, 0] += jnp.sum(elem)


def _round_up(x: int, m: int) -> int:
    return (x + m - 1) // m * m


def con_loss_entropy(features: jax.Array, labels: jax.Array,
                     *, tile: int = 256) -> jax.Array:
    """features: (B, D) float, labels: (B,) int -> scalar f32 loss."""
    assert tile % 128 == 0, "tile must be a multiple of 128"
    B, D = features.shape
    features = features.astype(jnp.float32)
    labels = labels.astype(jnp.int32)

    # Tile size: small batches get a single 8-aligned block; large batches
    # use `tile` (multiple of 128 -> label row blocks are lane-aligned).
    tb = _round_up(B, 8) if B <= tile else tile
    b_pad = _round_up(B, tb)
    nb = b_pad // tb
    pad = b_pad - B

    f_pad = jnp.pad(features, ((0, pad), (0, 0))) if pad else features

    if pad:
        # Sentinel labels for padded entries: strictly greater than any real
        # label, and the row/col sentinels differ, so no pad-involving pair
        # ever takes the positive branch; their cosine is 0 (zero features),
        # so the negative branch contributes max(-0.4, 0) == 0.
        sentinel = jnp.max(labels) + 1
        lab_col = jnp.concatenate(
            [labels, jnp.full((pad,), sentinel, jnp.int32)]).reshape(b_pad, 1)
        lab_row = jnp.concatenate(
            [labels, jnp.full((pad,), sentinel + 1, jnp.int32)]).reshape(1, b_pad)
    else:
        lab_col = labels.reshape(b_pad, 1)
        lab_row = labels.reshape(1, b_pad)

    # ---- Pass 1: normalize once (hoisted out of the (i, j) block loop). ----
    fn = pl.pallas_call(
        _normalize_kernel,
        out_shape=jax.ShapeDtypeStruct((b_pad, D), jnp.float32),
        grid=(nb,),
        in_specs=[pl.BlockSpec((tb, D), lambda i: (i, 0))],
        out_specs=pl.BlockSpec((tb, D), lambda i: (i, 0)),
        compiler_params=pltpu.CompilerParams(dimension_semantics=("parallel",)),
    )(f_pad)

    # ---- Pass 2: tiled sweep over the B x B similarity matrix. -------------
    # Per-row-block partial sums (SMEM scalars) so the i axis can be split
    # across TensorCores on v7x; j is the resident/accumulation axis.
    partials = pl.pallas_call(
        _con_loss_block_kernel,
        out_shape=jax.ShapeDtypeStruct((nb, 1), jnp.float32),
        grid=(nb, nb),
        in_specs=[
            pl.BlockSpec((tb, D), lambda i, j: (i, 0)),   # row feature block
            pl.BlockSpec((tb, D), lambda i, j: (j, 0)),   # col feature block
            pl.BlockSpec((tb, 1), lambda i, j: (i, 0)),   # row labels
            pl.BlockSpec((1, tb), lambda i, j: (0, j)),   # col labels
        ],
        out_specs=pl.BlockSpec((1, 1), lambda i, j: (i, 0),
                               memory_space=pltpu.MemorySpace.SMEM),
        compiler_params=pltpu.CompilerParams(
            dimension_semantics=("parallel", "arbitrary")),
    )(fn, fn, lab_col, lab_row)

    return jnp.sum(partials) / float(B * B)


# ----------------------------------------------------------------------------
# Pure-JAX reference mirroring the PyTorch module.
# ----------------------------------------------------------------------------
def _reference_con_loss(features, labels):
    B = features.shape[0]
    norm = jnp.sqrt(jnp.sum(features * features, axis=1, keepdims=True))
    fn = features / jnp.maximum(norm, 1e-12)
    cos = fn @ fn.T
    pos = (labels[:, None] == labels[None, :]).astype(jnp.float32)
    neg = 1.0 - pos
    return (jnp.sum((1.0 - cos) * pos)
            + jnp.sum(jnp.clip(cos - 0.4, 0.0, None) * neg)) / (B * B)


if __name__ == "__main__":
    key = jax.random.PRNGKey(0)
    kf, kl, kf2, kl2 = jax.random.split(key, 4)

    # Case 1: B multiple of 8 (no padding path).
    B, D = 8, 32
    features = jax.random.normal(kf, (B, D), dtype=jnp.float32)
    labels = jax.random.randint(kl, (B,), 0, 3, dtype=jnp.int32)
    loss = con_loss_entropy(features, labels)
    jax.block_until_ready(loss)
    ref = _reference_con_loss(features, labels)
    assert jnp.allclose(loss, ref, rtol=1e-5, atol=1e-5), (loss, ref)

    # Case 2: B not a multiple of 8 -> exercises padding + sentinel labels.
    B2, D2 = 20, 32
    features2 = jax.random.normal(kf2, (B2, D2), dtype=jnp.float32)
    labels2 = jax.random.randint(kl2, (B2,), 0, 5, dtype=jnp.int32)
    loss2 = con_loss_entropy(features2, labels2)
    jax.block_until_ready(loss2)
    ref2 = _reference_con_loss(features2, labels2)
    assert jnp.allclose(loss2, ref2, rtol=1e-5, atol=1e-5), (loss2, ref2)

    print("KERNEL_OK")
</pallas_src>

<mosaic_0001>
module attributes {stable_mosaic.version = 11 : i64} {
  func.func @_normalize_kernel(%arg0: i32, %arg1: memref<8x32xf32, #tpu.memory_space<vmem>>, %arg2: memref<8x32xf32, #tpu.memory_space<vmem>>) attributes {dimension_semantics = [#tpu.dimension_semantics<parallel>], iteration_bounds = array<i64: 1>, scalar_prefetch = 0 : i64, scratch_operands = 0 : i64, tpu.core_type = #tpu.core_type<tc>, window_params = [{transform_indices = @transform_0, window_bounds = array<i64: 8, 32>}, {transform_indices = @transform_1, window_bounds = array<i64: 8, 32>}]} {
    %c0 = arith.constant 0 : index
    %c0_0 = arith.constant 0 : index
    %0 = vector.load %arg1[%c0, %c0_0] : memref<8x32xf32, #tpu.memory_space<vmem>>, vector<8x32xf32>
    %1 = arith.mulf %0, %0 : vector<8x32xf32>
    %cst = arith.constant dense<0.000000e+00> : vector<8xf32>
    %2 = vector.multi_reduction <add>, %1, %cst [1] : vector<8x32xf32> to vector<8xf32>
    %3 = vector.shape_cast %2 : vector<8xf32> to vector<8x1xf32>
    %cst_1 = arith.constant 1.000000e-24 : f32
    %4 = vector.broadcast %cst_1 : f32 to vector<8x1xf32>
    %5 = arith.maximumf %3, %4 : vector<8x1xf32>
    %6 = math.rsqrt %5 : vector<8x1xf32>
    %7 = vector.broadcast %6 : vector<8x1xf32> to vector<8x32xf32>
    %8 = arith.mulf %0, %7 : vector<8x32xf32>
    %c0_2 = arith.constant 0 : index
    %c0_3 = arith.constant 0 : index
    %9 = vector.load %arg2[%c0_2, %c0_3] : memref<8x32xf32, #tpu.memory_space<vmem>>, vector<8x32xf32>
    tpu.vector_store %arg2[%c0_2, %c0_3], %8 {strides = array<i32>} : memref<8x32xf32, #tpu.memory_space<vmem>>, vector<8x32xf32>,
    return
  }
  func.func @transform_0(%arg0: i32) -> (i32, i32) {
    %c0_i32 = arith.constant 0 : i32
    %c0_i32_0 = arith.constant 0 : i32
    return %arg0, %c0_i32 : i32, i32
  }
  func.func @transform_1(%arg0: i32) -> (i32, i32) {
    %c0_i32 = arith.constant 0 : i32
    %c0_i32_0 = arith.constant 0 : i32
    return %arg0, %c0_i32 : i32, i32
  }
}

</mosaic_0001>

<llo_original>
// kernel: tpu_custom_call.1
$region0: #{tpu_custom_call.1}
  #allocation0 [shape = 'u32[]', space=smem, size = 0x4, offset = 0x4, fixed_abs, tag = 'smem constant byte address 0x4 - core index']
  #allocation1 [shape = 'u32[144,128]{1,0:T(1,128)}', space=vmem, size = 0x12000, scoped, tag = 'internal scratch']
  %s0 = inlined_call_operand.hbm [shape: f32[8,32], index: 0, kind: input, shape index: {}]
  %s1 = inlined_call_operand.hbm [shape: f32[8,32], index: 1, kind: output, shape index: {}]
  %s2 = sld [smem:[#allocation0]]
  $region18: #{tpu_custom_call.1} parent=0
    _
  %s4 = ssub.s32 1, %s2
  %s5 = scalar_select 0, %s4, %s2
  $region1: #{tpu_custom_call.1} parent=0
    #allocation2 [shape = 'u8[4096]{0}', space=vmem, size = 0x1000, scoped, tag = 'input window, operand 0, single buffered']
    #allocation3 [shape = 's32[1]{0}', space=sflag, size = 0x4, scoped, tag = 'scoped memory for tpu_custom_call.1']
    #allocation4 [shape = 's32[1]{0}', space=sflag, size = 0x4, scoped, tag = 'scoped memory for tpu_custom_call.1']
    #allocation5 [shape = 'u8[4096]{0}', space=vmem, size = 0x1000, scoped, tag = 'output window, operand 0, single buffered']
    %6 = vsyncpa [#allocation3], 0
    %7 = vsyncpa [#allocation4], 0
    // Predicated region
    $region2: #{tpu_custom_call.1} parent=1 // pred_check
      _
    $region3: #{tpu_custom_call.1} parent=1 // pred_check_branch
      %9 = sbr.rel (0) target = $region5
    $region4: #{tpu_custom_call.1} parent=1 // pred_region
      %s11 = ssub.s32 128, 128
      %12 = vsyncadd [#allocation3], %s11
      %s14 = sshll.u32 [#allocation2], 4
      %s15 = int_to_ptr.vmem [resolvable:$true] %s14
      %17 = dma.hbm_to_vmem [thread:$0]  %s0, 128, %s15, [#allocation3]
    $region5: #{tpu_custom_call.1} parent=1 // pred_fallthru
      _
    // Predicated region
    $region6: #{tpu_custom_call.1} parent=1 // pred_check
      _
    $region7: #{tpu_custom_call.1} parent=1 // pred_check_branch
      %19 = sbr.rel (0) target = $region9
    $region8: #{tpu_custom_call.1} parent=1 // pred_region
      %20 = dma.done [#allocation3], 128
    $region9: #{tpu_custom_call.1} parent=1 // pred_fallthru
      _
    %v21 = vld [vmem:[#allocation2] sm:$0xff]
    %v22 = vmul.f32 %v21, %v21
    %vm23 = vcmask 261120
    %v24 = vsel %vm23, %v22, 0.0
    %25 = vadd.xlane.f32.xlu0 %v24
    %v26 = vpop.xlane.xlu0 %25
    %v27 = vmax.f32 %v26, 1e-24
    %v28 = vrsqrt.pop %v27
    %v29 = vmul.f32 %v21, %v28
    %30 = vst.msk [vmem:[#allocation5] sm:$0xff] %vm23, %v29
    // Predicated region
    $region10: #{tpu_custom_call.1} parent=1 // pred_check
      _
    $region11: #{tpu_custom_call.1} parent=1 // pred_check_branch
      %32 = sbr.rel (0) target = $region13
    $region12: #{tpu_custom_call.1} parent=1 // pred_region
      %s34 = ssub.s32 128, 128
      %35 = vsyncadd [#allocation4], %s34
      %s37 = sshll.u32 [#allocation5], 4
      %s38 = int_to_ptr.vmem [resolvable:$true] %s37
      %40 = dma.vmem_to_hbm [thread:$0]  %s38, 128, %s1, [#allocation4]
    $region13: #{tpu_custom_call.1} parent=1 // pred_fallthru
      _
    // Predicated region
    $region14: #{tpu_custom_call.1} parent=1 // pred_check
      _
    $region15: #{tpu_custom_call.1} parent=1 // pred_check_branch
      %42 = sbr.rel (0) target = $region17
    $region16: #{tpu_custom_call.1} parent=1 // pred_region
      %43 = dma.done [#allocation4], 128
    $region17: #{tpu_custom_call.1} parent=1 // pred_fallthru
      _
    %44 = vsyncpa [#allocation3], 1
    %45 = vsyncpa [#allocation4], 1

</llo_original>
